<compile_context>
chip_gen: v5e
topology: v5e:2x2
jax: 0.10.0
libtpu: 0.0.40
codegen_flags: <defaults>
</compile_context>

<pallas_src>
import functools

import jax
import jax.numpy as jnp
from jax.experimental import pallas as pl
from jax.experimental.pallas import tpu as pltpu

_NEG_INF = -1e30  # exp() underflows to exactly 0; safer than -inf on all gens


def _mixco_kernel(mix_ref, p1_ref, p2_ref, pm_ref, out_ref, *, inv_temp):
    tile_n = p1_ref.shape[0]
    m = pm_ref.shape[1]
    row0 = pl.program_id(0) * tile_n
    mix_idx = mix_ref[0]  # scalar from SMEM (scalar prefetch)

    # Fold 1/temperature into the small [tile_n, D] lhs (stays bf16) instead of
    # scaling the [tile_n, M] dot output on the VPU.
    p1 = p1_ref[...] * jnp.asarray(inv_temp, p1_ref.dtype)   # bf16 [tile_n, D]
    p2 = p2_ref[...]                                         # bf16 [M, D]

    # MXU matmul: bf16 x bf16 -> f32 accumulate.
    dot = jax.lax.dot_general(
        p1, p2, (((1,), (1,)), ((), ())),
        preferred_element_type=jnp.float32)                  # f32 [tile_n, M]

    logits = dot - jnp.max(dot, axis=1, keepdims=True)

    # logits_mask: drop (row, row + mix_idx) for global rows >= mix_idx.
    # Compare local iotas against scalar thresholds (no full-tile
    # `row = iota + row0` int32 temporaries).
    r = jax.lax.broadcasted_iota(jnp.int32, (tile_n, m), 0)  # local row
    c = jax.lax.broadcasted_iota(jnp.int32, (tile_n, m), 1)  # column
    drop = (r >= mix_idx - row0) & ((c - r) == mix_idx + row0)

    # posmask streams as bf16; upcast once so the row sums accumulate in f32.
    pm = jnp.where(drop, 0.0, pm_ref[...].astype(jnp.float32))
    # f32 exp; on v6e/v7x a bf16 exp would ~2x EUP throughput once HBM is no
    # longer the limit (not done here: v5e has no bf16 EUP and HBM dominates).
    exp_logits = jnp.exp(jnp.where(drop, _NEG_INF, logits))

    logz = jnp.log(jnp.sum(exp_logits, axis=1, keepdims=True))   # [tile_n, 1]
    pm_sum = jnp.sum(pm, axis=1, keepdims=True)                  # [tile_n, 1]
    s = jnp.sum(pm * logits, axis=1, keepdims=True)              # [tile_n, 1]

    # -mean_log_prob_pos == logZ - sum(pm*logits)/sum(pm)  (no full-tile
    # log_prob materialization).  1/rowsum(pm) on the EUP slot.
    loss_row = logz - s * pl.reciprocal(pm_sum, approx=True)     # [tile_n, 1]

    # Lane-dense store: one (1, 1, tile_n) row per grid step (avoids narrow
    # 1-lane masked vst.msk column stores).
    out_ref[...] = loss_row.reshape(1, 1, tile_n)


def _vmem_limit_bytes():
    """~80% of this generation's VMEM (v7x: ~51 MiB; v5e/v6e: ~102 MiB)."""
    try:
        cap = int(pltpu.get_tpu_info().vmem_capacity_bytes)
    except Exception:
        cap = 64 * 1024 * 1024  # conservative fallback == v7x per-TC VMEM
    return int(cap * 0.8)


def _pick_tile_n(n, m, d, budget_bytes):
    """Largest row tile dividing N that fits the VMEM budget, then shrunk so
    there are >= 4 grid steps (keeps the posmask DMA pipelined and both v7x
    TensorCores busy under dimension_semantics=('parallel',))."""
    cands = [c for c in (512, 256, 128, 64, 32, 16, 8) if n % c == 0]
    if not cands:
        return n  # no multiple-of-8 divisor: single full-extent tile is legal

    def vmem_bytes(t):
        return (m * d * 2            # resident bf16 proj2 (single-buffered)
                + 2 * t * d * 2      # double-buffered bf16 proj1 tile
                + 2 * t * m * 2      # double-buffered bf16 posmask tile
                + 5 * t * m * 4      # ~5 live f32 [t, M] temporaries
                + 2 * t * 4)         # double-buffered output row

    tile_n = next((t for t in cands if vmem_bytes(t) <= budget_bytes), cands[-1])
    while n // tile_n < 4:
        smaller = [c for c in cands if c < tile_n]
        if not smaller:
            break
        tile_n = smaller[0]
    return tile_n


def mixco_loss(proj1, proj2, posmask, mix_idx, temperature=0.07, *, tile_n=None):
    n, d = proj1.shape
    m, d2 = proj2.shape
    assert d == d2 and posmask.shape == (n, m)

    # bf16 MXU operands (f32 accumulation happens inside the kernel).
    proj1 = proj1.astype(jnp.bfloat16)
    proj2 = proj2.astype(jnp.bfloat16)
    # posmask is the dominant streamed HBM traffic: keep it narrow (bf16) on
    # the wire; it is upcast to f32 inside the kernel.  Binary / 0-1 masks are
    # exact in bf16.
    posmask = posmask.astype(jnp.bfloat16)

    # Pad the feature dim to a multiple of 128: keeps MXU tiles full-rate and
    # DMAs unmasked; zero-padded features don't change the dot products.
    if d % 128 != 0:
        pad = (-d) % 128
        proj1 = jnp.pad(proj1, ((0, 0), (0, pad)))
        proj2 = jnp.pad(proj2, ((0, 0), (0, pad)))
        d += pad

    vmem_limit = _vmem_limit_bytes()
    if tile_n is None:
        tile_n = _pick_tile_n(n, m, d, int(vmem_limit * 0.85))
    assert n % tile_n == 0
    num_tiles = n // tile_n

    mix = jnp.asarray([mix_idx], dtype=jnp.int32)
    kernel = functools.partial(_mixco_kernel, inv_temp=1.0 / float(temperature))

    per_row = pl.pallas_call(
        kernel,
        out_shape=jax.ShapeDtypeStruct((num_tiles, 1, tile_n), jnp.float32),
        grid_spec=pltpu.PrefetchScalarGridSpec(
            num_scalar_prefetch=1,               # mix_idx -> SMEM
            grid=(num_tiles,),
            in_specs=[
                # streamed proj1 tile (double-buffered by default)
                pl.BlockSpec((tile_n, d), lambda i, mix: (i, 0)),
                # resident proj2: constant index_map -> single buffer
                pl.BlockSpec((m, d), lambda i, mix: (0, 0),
                             pipeline_mode=pl.Buffered(1)),
                # streamed bf16 posmask tile (the big HBM stream); on v5e,
                # pl.Buffered(3) here can hide the slower HBM if profiling
                # shows exposed DMA.
                pl.BlockSpec((tile_n, m), lambda i, mix: (i, 0)),
            ],
            out_specs=pl.BlockSpec((1, 1, tile_n), lambda i, mix: (i, 0, 0)),
        ),
        compiler_params=pltpu.CompilerParams(
            dimension_semantics=("parallel",),   # megacore-shards row tiles
            vmem_limit_bytes=vmem_limit,         # generation-aware, not 64 MiB
        ),
    )(mix, proj1, proj2, posmask)

    # num_tiles * tile_n == N elements -> mean over all == loss.mean().
    return jnp.mean(per_row)


def mixco_ref_f32(proj1, proj2, posmask, mix_idx, temperature=0.07):
    """Pure-JAX f32 reference matching the PyTorch forward exactly."""
    dot = (proj1 @ proj2.T) / temperature
    logits = dot - jnp.max(dot, axis=1, keepdims=True)
    n, m = posmask.shape
    row = jnp.arange(n)[:, None]
    col = jnp.arange(m)[None, :]
    lm = jnp.where((row >= mix_idx) & (col == row + mix_idx), 0.0, 1.0)
    pm = posmask * lm
    exp_logits = jnp.exp(logits) * lm
    log_prob = logits - jnp.log(exp_logits.sum(1, keepdims=True))
    mlp = (pm * log_prob).sum(1) / pm.sum(1)
    return -mlp.mean()


def mixco_ref_kernel_precision(proj1, proj2, posmask, mix_idx, temperature=0.07):
    """Reference mirroring the kernel's bf16 operands / bf16 posmask (tight check)."""
    inv_t = jnp.asarray(1.0 / temperature, jnp.bfloat16)
    p1 = proj1.astype(jnp.bfloat16) * inv_t
    p2 = proj2.astype(jnp.bfloat16)
    dot = jax.lax.dot_general(p1, p2, (((1,), (1,)), ((), ())),
                              preferred_element_type=jnp.float32)
    logits = dot - jnp.max(dot, axis=1, keepdims=True)
    n, m = posmask.shape
    row = jnp.arange(n)[:, None]
    col = jnp.arange(m)[None, :]
    drop = (row >= mix_idx) & (col == row + mix_idx)
    pm = jnp.where(drop, 0.0, posmask.astype(jnp.bfloat16).astype(jnp.float32))
    exp_logits = jnp.exp(jnp.where(drop, _NEG_INF, logits))
    logz = jnp.log(exp_logits.sum(1, keepdims=True))
    loss_row = logz - (pm * logits).sum(1, keepdims=True) / pm.sum(1, keepdims=True)
    return loss_row.mean()


if __name__ == "__main__":
    key = jax.random.PRNGKey(0)
    k1, k2, k3 = jax.random.split(key, 3)

    # Small shapes consistent with the forward: N anchors, M >= N + mix_idx
    # candidates so all (mix_idx + i, 2*mix_idx + i) indices are valid.
    N, D, M = 16, 32, 32
    mix_idx = 4

    proj1 = jax.random.normal(k1, (N, D), jnp.float32)
    proj2 = jax.random.normal(k2, (M, D), jnp.float32)
    proj1 = proj1 / jnp.linalg.norm(proj1, axis=1, keepdims=True)
    proj2 = proj2 / jnp.linalg.norm(proj2, axis=1, keepdims=True)
    # Positive-mask with strictly positive row sums (avoids 0/0, as in torch).
    posmask = jax.random.uniform(k3, (N, M), jnp.float32, minval=0.1, maxval=1.0)

    # Auto tile_n heuristic picks tile_n=8 here -> 2 grid steps (exercises the
    # pipelined, multi-tile path).
    loss = mixco_loss(proj1, proj2, posmask, mix_idx, temperature=0.07)
    jax.block_until_ready(loss)

    ref_tight = mixco_ref_kernel_precision(proj1, proj2, posmask, mix_idx, 0.07)
    ref_f32 = mixco_ref_f32(proj1, proj2, posmask, mix_idx, 0.07)
    assert bool(jnp.isfinite(loss)), loss
    assert jnp.allclose(loss, ref_tight, atol=1e-2, rtol=1e-2), (loss, ref_tight)
    # bf16 MXU operands / bf16 posmask -> looser tolerance vs. full-f32 reference.
    assert jnp.allclose(loss, ref_f32, atol=6e-2, rtol=6e-2), (loss, ref_f32)

    # Different mix_idx: goes through the same kernel config (SMEM scalar).
    loss2 = mixco_loss(proj1, proj2, posmask, 6, temperature=0.07)
    jax.block_until_ready(loss2)
    ref2 = mixco_ref_kernel_precision(proj1, proj2, posmask, 6, 0.07)
    assert jnp.allclose(loss2, ref2, atol=1e-2, rtol=1e-2), (loss2, ref2)

    print("KERNEL_OK")
</pallas_src>

<mosaic_0001>
module attributes {stable_mosaic.version = 11 : i64} {
  func.func @_mixco_kernel(%arg0: i32, %arg1: memref<1xi32, #tpu.memory_space<smem>>, %arg2: memref<8x128xbf16, #tpu.memory_space<vmem>>, %arg3: memref<32x128xbf16, #tpu.memory_space<vmem>>, %arg4: memref<8x32xbf16, #tpu.memory_space<vmem>>, %arg5: memref<1x1x8xf32, #tpu.memory_space<vmem>>) attributes {dimension_semantics = [#tpu.dimension_semantics<parallel>], iteration_bounds = array<i64: 2>, scalar_prefetch = 1 : i64, scratch_operands = 0 : i64, tpu.core_type = #tpu.core_type<tc>, window_params = [{transform_indices = @transform_0, window_bounds = array<i64: 8, 128>}, {pipeline_mode = #tpu.pipeline_mode<synchronous>, transform_indices = @transform_1, window_bounds = array<i64: 32, 128>}, {transform_indices = @transform_2, window_bounds = array<i64: 8, 32>}, {transform_indices = @transform_3, window_bounds = array<i64: 1, 1, 8>}]} {
    %c8_i32 = arith.constant 8 : i32
    %0 = arith.muli %arg0, %c8_i32 : i32
    %c0 = arith.constant 0 : index
    %1 = memref.load %arg1[%c0] : memref<1xi32, #tpu.memory_space<smem>>
    %c0_0 = arith.constant 0 : index
    %c0_1 = arith.constant 0 : index
    %2 = vector.load %arg2[%c0_0, %c0_1] : memref<8x128xbf16, #tpu.memory_space<vmem>>, vector<8x128xbf16>
    %cst = arith.constant 1.431250e+01 : bf16
    %3 = vector.broadcast %cst : bf16 to vector<8x128xbf16>
    %4 = arith.mulf %2, %3 : vector<8x128xbf16>
    %c0_2 = arith.constant 0 : index
    %c0_3 = arith.constant 0 : index
    %5 = vector.load %arg3[%c0_2, %c0_3] : memref<32x128xbf16, #tpu.memory_space<vmem>>, vector<32x128xbf16>
    %cst_4 = arith.constant dense<0.000000e+00> : vector<8x32xf32>
    %6 = tpu.matmul %4, %5, %cst_4 {dimension_numbers = #tpu.dot_dimension_numbers<[1], [1], [0], [0], [0, 0, 1, 0], [], []>} : vector<8x128xbf16>, vector<32x128xbf16>, vector<8x32xf32> -> vector<8x32xf32>
    %cst_5 = arith.constant dense<0xFF800000> : vector<8xf32>
    %7 = vector.multi_reduction <maximumf>, %6, %cst_5 [1] : vector<8x32xf32> to vector<8xf32>
    %8 = vector.shape_cast %7 : vector<8xf32> to vector<8x1xf32>
    %9 = vector.broadcast %8 : vector<8x1xf32> to vector<8x32xf32>
    %10 = arith.subf %6, %9 : vector<8x32xf32>
    %11 = tpu.iota {dimensions = array<i32: 0>} : vector<8x32xi32>
    %12 = tpu.iota {dimensions = array<i32: 1>} : vector<8x32xi32>
    %13 = arith.subi %1, %0 : i32
    %14 = vector.broadcast %13 : i32 to vector<8x32xi32>
    %15 = arith.cmpi sge, %11, %14 : vector<8x32xi32>
    %16 = arith.subi %12, %11 : vector<8x32xi32>
    %17 = arith.addi %1, %0 : i32
    %18 = vector.broadcast %17 : i32 to vector<8x32xi32>
    %19 = arith.cmpi eq, %16, %18 : vector<8x32xi32>
    %20 = arith.andi %15, %19 : vector<8x32xi1>
    %c0_6 = arith.constant 0 : index
    %c0_7 = arith.constant 0 : index
    %21 = vector.load %arg4[%c0_6, %c0_7] : memref<8x32xbf16, #tpu.memory_space<vmem>>, vector<8x32xbf16>
    %22 = arith.extf %21 : vector<8x32xbf16> to vector<8x32xf32>
    %cst_8 = arith.constant 0.000000e+00 : f32
    %23 = vector.broadcast %cst_8 : f32 to vector<8x32xf32>
    %24 = arith.select %20, %23, %22 : vector<8x32xi1>, vector<8x32xf32>
    %cst_9 = arith.constant -1.000000e+30 : f32
    %25 = vector.broadcast %cst_9 : f32 to vector<8x32xf32>
    %26 = arith.select %20, %25, %10 : vector<8x32xi1>, vector<8x32xf32>
    %27 = math.exp %26 : vector<8x32xf32>
    %cst_10 = arith.constant dense<0.000000e+00> : vector<8xf32>
    %28 = vector.multi_reduction <add>, %27, %cst_10 [1] : vector<8x32xf32> to vector<8xf32>
    %29 = vector.shape_cast %28 : vector<8xf32> to vector<8x1xf32>
    %30 = math.log %29 : vector<8x1xf32>
    %cst_11 = arith.constant dense<0.000000e+00> : vector<8xf32>
    %31 = vector.multi_reduction <add>, %24, %cst_11 [1] : vector<8x32xf32> to vector<8xf32>
    %32 = vector.shape_cast %31 : vector<8xf32> to vector<8x1xf32>
    %33 = arith.mulf %24, %10 : vector<8x32xf32>
    %cst_12 = arith.constant dense<0.000000e+00> : vector<8xf32>
    %34 = vector.multi_reduction <add>, %33, %cst_12 [1] : vector<8x32xf32> to vector<8xf32>
    %35 = vector.shape_cast %34 : vector<8xf32> to vector<8x1xf32>
    %36 = tpu.reciprocal %32 {approx = true} : vector<8x1xf32> -> vector<8x1xf32>
    %37 = arith.mulf %35, %36 : vector<8x1xf32>
    %38 = arith.subf %30, %37 : vector<8x1xf32>
    %39 = vector.shape_cast %38 : vector<8x1xf32> to vector<1x1x8xf32>
    %c0_13 = arith.constant 0 : index
    %c0_14 = arith.constant 0 : index
    %c0_15 = arith.constant 0 : index
    %40 = vector.load %arg5[%c0_13, %c0_14, %c0_15] : memref<1x1x8xf32, #tpu.memory_space<vmem>>, vector<1x1x8xf32>
    tpu.vector_store %arg5[%c0_13, %c0_14, %c0_15], %39 {strides = array<i32>} : memref<1x1x8xf32, #tpu.memory_space<vmem>>, vector<1x1x8xf32>,
    return
  }
  func.func @transform_0(%arg0: i32, %arg1: memref<1xi32, #tpu.memory_space<smem>>) -> (i32, i32) {
    %c0_i32 = arith.constant 0 : i32
    %c0_i32_0 = arith.constant 0 : i32
    return %arg0, %c0_i32 : i32, i32
  }
  func.func @transform_1(%arg0: i32, %arg1: memref<1xi32, #tpu.memory_space<smem>>) -> (i32, i32) {
    %c0_i32 = arith.constant 0 : i32
    %c0_i32_0 = arith.constant 0 : i32
    %c0_i32_1 = arith.constant 0 : i32
    return %c0_i32, %c0_i32_0 : i32, i32
  }
  func.func @transform_2(%arg0: i32, %arg1: memref<1xi32, #tpu.memory_space<smem>>) -> (i32, i32) {
    %c0_i32 = arith.constant 0 : i32
    %c0_i32_0 = arith.constant 0 : i32
    return %arg0, %c0_i32 : i32, i32
  }
  func.func @transform_3(%arg0: i32, %arg1: memref<1xi32, #tpu.memory_space<smem>>) -> (i32, i32, i32) {
    %c0_i32 = arith.constant 0 : i32
    %c0_i32_0 = arith.constant 0 : i32
    %c0_i32_1 = arith.constant 0 : i32
    return %arg0, %c0_i32, %c0_i32_0 : i32, i32, i32
  }
}

</mosaic_0001>

<llo_original>
// kernel: tpu_custom_call.1
$region0: #{tpu_custom_call.1}
  #allocation0 [shape = 'u32[]', space=smem, size = 0x4, offset = 0x4, fixed_abs, tag = 'smem constant byte address 0x4 - core index']
  #allocation1 [shape = 'u32[72,128]{1,0:T(1,128)}', space=vmem, size = 0x9000, scoped, tag = 'internal scratch']
  #allocation2 [shape = 's32[1]{0}', space=sflag, size = 0x4, scoped, tag = 'scoped memory for tpu_custom_call.1']
  #allocation3 [shape = 's32[1]{0:T(128)S(6)}', space=smem, size = 0x200, scoped, tag = 'prefetched SMEM operand 0']
  %s0 = inlined_call_operand.<no memory space> [shape: s32[1], index: 0, kind: input, shape index: {}]
  %s1 = inlined_call_operand.hbm [shape: bf16[16,128], index: 1, kind: input, shape index: {}]
  %s2 = inlined_call_operand.hbm [shape: bf16[32,128], index: 2, kind: input, shape index: {}]
  %s3 = inlined_call_operand.hbm [shape: bf16[16,32], index: 3, kind: input, shape index: {}]
  %s4 = inlined_call_operand.hbm [shape: f32[2,1,8], index: 4, kind: output, shape index: {}]
  %s5 = sld [smem:[#allocation0]]
  $region57: #{tpu_custom_call.1} parent=0
    _
  %s7 = ssub.s32 1, %s5
  %s8 = scalar_select 0, %s7, %s5
  %9 = sst [smem:[#allocation3]] %s0
  $region1: #{tpu_custom_call.1} parent=0
    #allocation4 [shape = 'u8[4096]{0}', space=vmem, size = 0x1000, scoped, tag = 'input window, operand 1']
    #allocation5 [shape = 's32[2]{0}', space=sflag, size = 0x8, scoped, tag = 'scoped memory for tpu_custom_call.1']
    #allocation6 [shape = 's32[2]{0}', space=sflag, size = 0x8, scoped, tag = 'scoped memory for tpu_custom_call.1']
    #allocation7 [shape = 'u8[8192]{0}', space=vmem, size = 0x2000, scoped, tag = 'input window, operand 2, single buffered']
    #allocation8 [shape = 's32[1]{0}', space=sflag, size = 0x4, scoped, tag = 'scoped memory for tpu_custom_call.1']
    #allocation9 [shape = 'u8[4096]{0}', space=vmem, size = 0x1000, scoped, tag = 'input window, operand 3']
    #allocation10 [shape = 'u8[1024]{0}', space=vmem, size = 0x400, scoped, tag = 'output window, operand 0']
    %10 = vsyncpa [#allocation5], 0
    %s11 = scalar_lea.sflag [#allocation5], 1
    %12 = vsyncpa %s11, 0
    %13 = vsyncpa [#allocation8], 0
    %14 = vsyncpa [#allocation6], 0
    %s15 = scalar_lea.sflag [#allocation6], 1
    %16 = vsyncpa %s15, 0
    loop: start=0, step=1, limit=4
    $region2: #{tpu_custom_call.1} parent=1 // loop_pre_header
      _
    $region3: #{tpu_custom_call.1} parent=1 // loop_header
      %s18 = sphi 0, %s22
      %p19 = scmp.ge.s32.totalorder %s18, 4
      %s28 = sphi 0, %s30
      %s31 = sphi 0, %s28
      %s32 = sphi 0, %s31
      %s48 = sphi 0, %s32
      %s52 = sphi 0, %s52
      %s54 = sphi 0, %s52
      %s55 = sphi 0, %s54
      %s69 = sphi 0, %s55
      %s75 = sphi 0, %s77
      %s78 = sphi 0, %s75
      %s79 = sphi 0, %s78
      %s95 = sphi 0, %s79
      %s101 = sphi 0, %s103
      %s104 = sphi 0, %s101
      %s105 = sphi 0, %s104
      %s121 = sphi 0, %s105
    $region4: #{tpu_custom_call.1} parent=1 // loop_header_branch
      %21 = sbr.rel (%p19) target = $region8
    $region5: #{tpu_custom_call.1} parent=1 // loop_body
      %s23 = ssub.s32 %s18, 1
      %s24 = ssub.s32 %s18, 2
      %s25 = sadd.s32 %s18, 1
      %s26 = ssub.s32 %s18, %s25
      %p27 = scmp.eq.s32.totalorder %s26, 0
      %s29 = sadd.s32 %s28, 1
      %s30 = scalar_select %p27, %s28, %s29
      %p33 = pneg %p27
      %p34 = scmp.eq.s32.totalorder %s18, 1
      %p35 = por %p33, %p34
      %p36 = scmp.ne.s32.totalorder %s28, %s31
      %p37 = scmp.eq.s32.totalorder %s18, 0
      %p38 = por %p36, %p37
      %p39 = scmp.ne.s32.totalorder %s28, %s31
      %p40 = scmp.eq.s32.totalorder %s23, 1
      %p41 = por %p39, %p40
      %p42 = scmp.ne.s32.totalorder %s31, %s32
      %p43 = scmp.eq.s32.totalorder %s23, 0
      %p44 = por %p42, %p43
      %p45 = scmp.ne.s32.totalorder %s31, %s32
      %p46 = scmp.eq.s32.totalorder %s24, 1
      %p47 = por %p45, %p46
      %p49 = scmp.ne.s32.totalorder %s32, %s48
      %p50 = scmp.eq.s32.totalorder %s24, 0
      %p51 = por %p49, %p50
      %s53 = sadd.s32 %s52, 1
      %p56 = scmp.eq.s32.totalorder %s18, 1
      %p57 = scmp.ne.s32.totalorder %s52, %s54
      %p58 = scmp.eq.s32.totalorder %s18, 0
      %p59 = por %p57, %p58
      %p60 = scmp.ne.s32.totalorder %s52, %s54
      %p61 = scmp.eq.s32.totalorder %s23, 1
      %p62 = por %p60, %p61
      %p63 = scmp.ne.s32.totalorder %s54, %s55
      %p64 = scmp.eq.s32.totalorder %s23, 0
      %p65 = por %p63, %p64
      %p66 = scmp.ne.s32.totalorder %s54, %s55
      %p67 = scmp.eq.s32.totalorder %s24, 1
      %p68 = por %p66, %p67
      %p70 = scmp.ne.s32.totalorder %s55, %s69
      %p71 = scmp.eq.s32.totalorder %s24, 0
      %p72 = por %p70, %p71
      %s73 = ssub.s32 %s18, %s25
      %p74 = scmp.eq.s32.totalorder %s73, 0
      %s76 = sadd.s32 %s75, 1
      %s77 = scalar_select %p74, %s75, %s76
      %p80 = pneg %p74
      %p81 = scmp.eq.s32.totalorder %s18, 1
      %p82 = por %p80, %p81
      %p83 = scmp.ne.s32.totalorder %s75, %s78
      %p84 = scmp.eq.s32.totalorder %s18, 0
      %p85 = por %p83, %p84
      %p86 = scmp.ne.s32.totalorder %s75, %s78
      %p87 = scmp.eq.s32.totalorder %s23, 1
      %p88 = por %p86, %p87
      %p89 = scmp.ne.s32.totalorder %s78, %s79
      %p90 = scmp.eq.s32.totalorder %s23, 0
      %p91 = por %p89, %p90
      %p92 = scmp.ne.s32.totalorder %s78, %s79
      %p93 = scmp.eq.s32.totalorder %s24, 1
      %p94 = por %p92, %p93
      %p96 = scmp.ne.s32.totalorder %s79, %s95
      %p97 = scmp.eq.s32.totalorder %s24, 0
      %p98 = por %p96, %p97
      %s99 = ssub.s32 %s18, %s25
      %p100 = scmp.eq.s32.totalorder %s99, 0
      %s102 = sadd.s32 %s101, 1
      %s103 = scalar_select %p100, %s101, %s102
      %p106 = pneg %p100
      %p107 = scmp.eq.s32.totalorder %s18, 1
      %p108 = por %p106, %p107
      %p109 = scmp.ne.s32.totalorder %s101, %s104
      %p110 = scmp.eq.s32.totalorder %s18, 0
      %p111 = por %p109, %p110
      %p112 = scmp.ne.s32.totalorder %s101, %s104
      %p113 = scmp.eq.s32.totalorder %s23, 1
      %p114 = por %p112, %p113
      %p115 = scmp.ne.s32.totalorder %s104, %s105
      %p116 = scmp.eq.s32.totalorder %s23, 0
      %p117 = por %p115, %p116
      %p118 = scmp.ne.s32.totalorder %s104, %s105
      %p119 = scmp.eq.s32.totalorder %s24, 1
      %p120 = por %p118, %p119
      %p122 = scmp.ne.s32.totalorder %s105, %s121
      %p123 = scmp.eq.s32.totalorder %s24, 0
      %p124 = por %p122, %p123
      %p125 = scmp.le.s32.totalorder 1, %s18
      %p126 = scmp.lt.s32.totalorder %s18, 3
      %p127 = pnand %p125, %p126
      %p128 = pneg %p127
      // Predicated region
      $region9: #{tpu_custom_call.1} parent=5 // pred_check
        _
      $region10: #{tpu_custom_call.1} parent=5 // pred_check_branch
        %130 = sbr.rel (%p127) target = $region12
      $region11: #{tpu_custom_call.1} parent=5 // pred_region
        %s131 = ssub.s32 %s18, 1
        // Predicated region
        $region13: #{tpu_custom_call.1} parent=11 // pred_check
          %p132 = pneg %p65
        $region14: #{tpu_custom_call.1} parent=11 // pred_check_branch
          %134 = sbr.rel (%p132) target = $region16
        $region15: #{tpu_custom_call.1} parent=11 // pred_region
          %136 = vsyncadd [#allocation8], 0
          %s137 = sshll.u32 %s2, 4
          %s138 = int_to_ptr.hbm [resolvable:$true] %s137
          %s139 = sshll.u32 [#allocation7], 4
          %s140 = int_to_ptr.vmem [resolvable:$true] %s139
          %145 = dma.hbm_to_vmem [thread:$0]  %s138, 256, %s140, [#allocation8], 64, 64, 4
        $region16: #{tpu_custom_call.1} parent=11 // pred_fallthru
          _
      $region12: #{tpu_custom_call.1} parent=5 // pred_fallthru
        _
      %p146 = scmp.lt.s32.totalorder %s18, 2
      // Predicated region
      $region17: #{tpu_custom_call.1} parent=5 // pred_check
        %p147 = pneg %p146
      $region18: #{tpu_custom_call.1} parent=5 // pred_check_branch
        %149 = sbr.rel (%p147) target = $region20
      $region19: #{tpu_custom_call.1} parent=5 // pred_region
        // Predicated region
        $region21: #{tpu_custom_call.1} parent=19 // pred_check
          %p150 = pneg %p38
        $region22: #{tpu_custom_call.1} parent=19 // pred_check_branch
          %152 = sbr.rel (%p150) target = $region24
        $region23: #{tpu_custom_call.1} parent=19 // pred_region
          %s153 = sand.u32 %s18, 1
          %s154 = scalar_lea.sflag [#allocation5], %s153
          %s155 = sand.u32 %s28, 1
          %s156 = smul.addr %s155, 4
          %s157 = scalar_lea.vmem [#allocation4], %s156
          %159 = vsyncadd %s154, 0
          %s160 = smul.addr %s18, 4
          %s161 = scalar_lea.hbm %s1, %s160
          %s163 = sshll.u32 %s161, 4
          %s164 = int_to_ptr.hbm [resolvable:$true] %s163
          %s165 = sshll.u32 %s157, 4
          %s166 = int_to_ptr.vmem [resolvable:$true] %s165
          %168 = dma.hbm_to_vmem [thread:$0]  %s164, 64, %s166, %s154
        $region24: #{tpu_custom_call.1} parent=19 // pred_fallthru
          _
        // Predicated region
        $region25: #{tpu_custom_call.1} parent=19 // pred_check
          %p169 = pneg %p85
        $region26: #{tpu_custom_call.1} parent=19 // pred_check_branch
          %171 = sbr.rel (%p169) target = $region28
        $region27: #{tpu_custom_call.1} parent=19 // pred_region
          %s172 = sand.u32 %s18, 1
          %s173 = scalar_lea.sflag [#allocation5], %s172
          %s174 = sand.u32 %s75, 1
          %s175 = smul.addr %s174, 4
          %s176 = scalar_lea.vmem [#allocation9], %s175
          %178 = vsyncadd %s173, 0
          %s179 = smul.addr %s18, 4
          %s180 = scalar_lea.hbm %s3, %s179
          %s182 = sshll.u32 %s180, 4
          %s183 = int_to_ptr.hbm [resolvable:$true] %s182
          %s184 = sshll.u32 %s176, 4
          %s185 = int_to_ptr.vmem [resolvable:$true] %s184
          %187 = dma.hbm_to_vmem [thread:$0]  %s183, 64, %s185, %s173
        $region28: #{tpu_custom_call.1} parent=19 // pred_fallthru
          _
      $region20: #{tpu_custom_call.1} parent=5 // pred_fallthru
        _
      %p188 = scmp.le.s32.totalorder 1, %s18
      %p189 = scmp.lt.s32.totalorder %s18, 3
      %p190 = pnand %p188, %p189
      %p191 = pneg %p190
      // Predicated region
      $region29: #{tpu_custom_call.1} parent=5 // pred_check
        _
      $region30: #{tpu_custom_call.1} parent=5 // pred_check_branch
        %193 = sbr.rel (%p190) target = $region32
      $region31: #{tpu_custom_call.1} parent=5 // pred_region
        %s194 = ssub.s32 %s18, 1
        %s195 = sand.u32 %s23, 1
        %s196 = scalar_lea.sflag [#allocation5], %s195
        %s197 = sand.u32 %s31, 1
        %s198 = smul.addr %s197, 4
        %s199 = scalar_lea.vmem [#allocation4], %s198
        // Predicated region
        $region33: #{tpu_custom_call.1} parent=31 // pred_check
          %p200 = pneg %p44
        $region34: #{tpu_custom_call.1} parent=31 // pred_check_branch
          %202 = sbr.rel (%p200) target = $region36
        $region35: #{tpu_custom_call.1} parent=31 // pred_region
          %204 = dma.done %s196, 64
        $region36: #{tpu_custom_call.1} parent=31 // pred_fallthru
          _
        // Predicated region
        $region37: #{tpu_custom_call.1} parent=31 // pred_check
          %p205 = pneg %p65
        $region38: #{tpu_custom_call.1} parent=31 // pred_check_branch
          %207 = sbr.rel (%p205) target = $region40
        $region39: #{tpu_custom_call.1} parent=31 // pred_region
          %209 = dma.done [#allocation8], 256
        $region40: #{tpu_custom_call.1} parent=31 // pred_fallthru
          _
        %s210 = sand.u32 %s23, 1
        %s211 = scalar_lea.sflag [#allocation5], %s210
        %s212 = sand.u32 %s78, 1
        %s213 = smul.addr %s212, 4
        %s214 = scalar_lea.vmem [#allocation9], %s213
        // Predicated region
        $region41: #{tpu_custom_call.1} parent=31 // pred_check
          %p215 = pneg %p91
        $region42: #{tpu_custom_call.1} parent=31 // pred_check_branch
          %217 = sbr.rel (%p215) target = $region44
        $region43: #{tpu_custom_call.1} parent=31 // pred_region
          %219 = dma.done %s211, 64
        $region44: #{tpu_custom_call.1} parent=31 // pred_fallthru
          _
        %s220 = sand.u32 %s23, 1
        %s221 = scalar_lea.sflag [#allocation5], %s220
        %s222 = sand.u32 %s31, 1
        %s223 = smul.addr %s222, 4
        %s224 = scalar_lea.vmem [#allocation4], %s223
        %p225 = pneg %p44
        %p226 = pneg %p41
        %p227 = pneg %p65
        %p228 = pneg %p62
        %s229 = sand.u32 %s23, 1
        %s230 = scalar_lea.sflag [#allocation5], %s229
        %s231 = sand.u32 %s78, 1
        %s232 = smul.addr %s231, 4
        %s233 = scalar_lea.vmem [#allocation9], %s232
        %p234 = pneg %p91
        %p235 = pneg %p88
        %p236 = pneg %p117
        %p237 = pneg %p114
        %s238 = sand.u32 %s104, 1
        %s239 = scalar_lea.sflag [#allocation6], %s238
        %s240 = sand.u32 %s104, 1
        %s241 = scalar_lea.vmem [#allocation10], %s240
        %s243 = smul.u32 %s23, 8
        %s244 = sld [smem:[#allocation3]]
        %v245 = vld [vmem:[%s199] sm:$0xf]
        %v246 = vunpack.c.l.bf16 %v245
        %v247 = vmul.f32 %v246, 14.3125
        %v248 = vpack.c.bf16 %v247, %v247
        %v249 = vld [vmem:[#allocation7] sm:$0xf]
        %v250 = vld [vmem:[#allocation7 + $0x4] sm:$0xf]
        %v251 = vld [vmem:[#allocation7 + $0x8] sm:$0xf]
        %v252 = vld [vmem:[#allocation7 + $0xc] sm:$0xf]
        %v257 = vunpack.c.l.b16 %v249
        %v258 = vunpack.c.l.b16 %v250
        %v259 = vunpack.c.l.b16 %v251
        %v260 = vunpack.c.l.b16 %v252
        %v261 = vpack.c.b16 %v258, %v257
        %v262 = vpack.c.b16 %v260, %v259
        %265 = vmatpush.bf16.xpose.msra.mxu0 0
        %266 = vmatpush.bf16.xpose.msra.mxu0 0
        %267 = vmatpush.bf16.xpose.msra.mxu0 0
        %268 = vmatpush.bf16.xpose.msra.mxu0 0
        %269 = vmatpush.bf16.xpose.msra.mxu0 0
        %270 = vmatpush.bf16.xpose.msra.mxu0 0
        %271 = vmatpush.bf16.xpose.msra.mxu0 %v262
        %272 = vmatpush.bf16.xpose.msra.mxu0 %v261
        %273 = vmatmul.bf16.gmra.mxu0 %v248
        %v274 = vpop.f32.mrf.mxu0
        %v275 = vadd.f32 0.0, %v274
        %v276 = vpop.f32.mrf.mxu0
        %277 = vdwg.mxu0
        %vm278 = vcmask 261120
        %v279 = vsel %vm278, %v275, -inf
        %280 = vmax.xlane.f32.xlu0 %v279
        %v281 = vpop.xlane.xlu0 %280
        %v282 = vsub.f32 %v275, %v281
        %v283 = vlaneseq
        %v284 = vshrl.u32 %v283, 7
        %v285 = vlaneseq
        %v286 = vand.u32 %v285, 127
        %s287 = ssub.s32 %s244, %s243
        %v288 = vstv %s287
        %vm289 = vcmp.ge.s32.totalorder %v284, %v288
        %v290 = vsub.s32 %v286, %v284
        %s291 = sadd.s32 %s244, %s243
        %v292 = vstv %s291
        %vm293 = vcmp.eq.s32.totalorder %v290, %v292
        %vm294 = vmand %vm289, %vm293
        %v295 = vld [vmem:[%s214] sm:$0xf]
        %v296 = vunpack.c.l.bf16 %v295
        %v297 = vsel %vm294, 0.0, %v296
        %v298 = vsel %vm294, -1e+30, %v282
        %v299 = vmul.f32 %v298, 1.442695
        %v300 = vpow.pop %v299
        %v301 = vsel %vm278, %v300, 0.0
        %302 = vadd.xlane.f32.xlu0 %v301
        %v303 = vpop.xlane.xlu0 %302
        %v304 = vlog2.pop %v303
        %v305 = vmul.f32 %v304, 0.6931472
        %v306 = vsel %vm278, %v297, 0.0
        %307 = vadd.xlane.f32.xlu0 %v306
        %v308 = vpop.xlane.xlu0 %307
        %v309 = vmul.f32 %v297, %v282
        %v310 = vsel %vm278, %v309, 0.0
        %311 = vadd.xlane.f32.xlu0 %v310
        %v312 = vpop.xlane.xlu0 %311
        %v313 = vrcp.pop %v308
        %v314 = vmul.f32 %v312, %v313
        %v315 = vsub.f32 %v305, %v314
        %v317 = vperm.slane %v315, %v286
        %vm319 = vcmask 57344
        %320 = vst.msk [vmem:[%s241] sm:$0x1] %vm319, %v317
        %s321 = sand.u32 %s104, 1
        %s322 = scalar_lea.sflag [#allocation6], %s321
        %s323 = sand.u32 %s104, 1
        %s324 = scalar_lea.vmem [#allocation10], %s323
        // Predicated region
        $region45: #{tpu_custom_call.1} parent=31 // pred_check
          %p325 = pneg %p114
        $region46: #{tpu_custom_call.1} parent=31 // pred_check_branch
          %327 = sbr.rel (%p325) target = $region48
        $region47: #{tpu_custom_call.1} parent=31 // pred_region
          %329 = vsyncadd %s322, 0
          %s330 = scalar_lea.hbm %s4, %s23
          %s332 = sshll.u32 %s324, 4
          %s333 = int_to_ptr.vmem [resolvable:$true] %s332
          %s334 = sshll.u32 %s330, 4
          %s335 = int_to_ptr.hbm [resolvable:$true] %s334
          %337 = dma.vmem_to_hbm [thread:$0]  %s333, 16, %s335, %s322
        $region48: #{tpu_custom_call.1} parent=31 // pred_fallthru
          _
      $region32: #{tpu_custom_call.1} parent=5 // pred_fallthru
        _
      %p338 = scmp.le.s32.totalorder 2, %s18
      // Predicated region
      $region49: #{tpu_custom_call.1} parent=5 // pred_check
        %p339 = pneg %p338
      $region50: #{tpu_custom_call.1} parent=5 // pred_check_branch
        %341 = sbr.rel (%p339) target = $region52
      $region51: #{tpu_custom_call.1} parent=5 // pred_region
        %s342 = ssub.s32 %s18, 2
        // Predicated region
        $region53: #{tpu_custom_call.1} parent=51 // pred_check
          %p343 = pneg %p120
        $region54: #{tpu_custom_call.1} parent=51 // pred_check_branch
          %345 = sbr.rel (%p343) target = $region56
        $region55: #{tpu_custom_call.1} parent=51 // pred_region
          %s346 = sand.u32 %s105, 1
          %s347 = scalar_lea.sflag [#allocation6], %s346
          %s348 = sand.u32 %s105, 1
          %s349 = scalar_lea.vmem [#allocation10], %s348
          %351 = dma.done %s347, 16
        $region56: #{tpu_custom_call.1} parent=51 // pred_fallthru
          _
      $region52: #{tpu_custom_call.1} parent=5 // pred_fallthru
        _
    $region6: #{tpu_custom_call.1} parent=1 // loop_footer
      %s22 = sadd.s32 1, %s18
    $region7: #{tpu_custom_call.1} parent=1 // loop_footer_branch
      %17 = sbr.rel target = $region3
    $region8: #{tpu_custom_call.1} parent=1 // loop_exit
      _
    %352 = vsyncpa [#allocation5], 1
    %s353 = scalar_lea.sflag [#allocation5], 1
    %354 = vsyncpa %s353, 1
    %355 = vsyncpa [#allocation8], 1
    %356 = vsyncpa [#allocation6], 1
    %s357 = scalar_lea.sflag [#allocation6], 1
    %358 = vsyncpa %s357, 1

</llo_original>
